<compile_context>
chip_gen: v5e
topology: v5e:2x2
jax: 0.10.0
libtpu: 0.0.40
codegen_flags: <defaults>
</compile_context>

<pallas_src>
import jax
import jax.numpy as jnp
from jax.experimental import pallas as pl
from jax.experimental.pallas import tpu as pltpu

_LANE = 128
_SUBLANE = {4: 8, 2: 16, 1: 32}   # itemsize -> sublane multiple


def _round_up(x, m):
    return (x + m - 1) // m * m


def _gated_fusion_kernel(b_ref, hf_ref, hs_ref, wf_ref, ws_ref, has_ref, out_ref):
    hf = hf_ref[...]                              # (TB, Dp) input dtype
    hs = hs_ref[...]                              # (TB, Dp) input dtype

    # Gate logit reduction in f32 (VPU elementwise + XLU cross-lane reduce).
    hf32 = hf.astype(jnp.float32)
    hs32 = hs.astype(jnp.float32)
    wf = wf_ref[...]                              # (1, Dp) f32, broadcasts
    ws = ws_ref[...]                              # (1, Dp) f32
    z = jnp.sum(hf32 * wf + hs32 * ws, axis=-1, keepdims=True) + b_ref[0]  # (TB,1)

    gate = (jax.nn.sigmoid(z) * has_ref[...]).astype(hf.dtype)             # (TB,1)
    out_ref[...] = hf + gate * hs                                          # (TB,Dp)


def gated_fusion(h_f, h_s, has_s, weight, bias, *,
                 tile_b=None,
                 target_block_bytes=4 * 1024 * 1024,
                 vmem_limit_bytes=48 * 1024 * 1024):
    """h_f, h_s: (B, D); has_s: (B, 1); weight: (1, 2D); bias: (1,)."""
    B, D = h_f.shape
    dtype = h_f.dtype
    itemsize = jnp.dtype(dtype).itemsize
    sub = _SUBLANE.get(itemsize, 8)

    # Lane-dense feature dim.
    Dp = _round_up(D, _LANE)

    # --- tile_b selection -------------------------------------------------
    if tile_b is None:
        rows = target_block_bytes // (Dp * itemsize)     # ~4 MiB per block
        rows = max(sub, min(1024, rows))
        rows = (rows // sub) * sub
        b_rows = _round_up(B, sub)
        if b_rows <= rows:
            # Whole batch fits in one tile. Split in two for v7x megacore if
            # each half still has >=256 rows (per-step overhead otherwise
            # dominates for this mem-bound kernel).
            if b_rows >= 512:
                tile_b = _round_up((b_rows + 1) // 2, sub)
            else:
                tile_b = b_rows
        else:
            tile_b = rows
    else:
        if tile_b != B and tile_b % sub != 0:
            raise ValueError(
                f"tile_b={tile_b} must be a multiple of {sub} for dtype {dtype} "
                f"(or equal to B={B})")
    # TODO(synk): for extremely large D (block can't reach >=8 rows within the
    # VMEM budget) add a D grid axis with a (tile_b,1) accumulator scratch.

    Bp = _round_up(B, tile_b)

    # --- padding / weight split -------------------------------------------
    w_f = weight[:, :D].astype(jnp.float32)
    w_s = weight[:, D:].astype(jnp.float32)
    if Dp != D:
        w_f = jnp.pad(w_f, ((0, 0), (0, Dp - D)))
        w_s = jnp.pad(w_s, ((0, 0), (0, Dp - D)))

    if (Bp != B) or (Dp != D):
        h_f_p = jnp.pad(h_f, ((0, Bp - B), (0, Dp - D)))
        h_s_p = jnp.pad(h_s, ((0, Bp - B), (0, Dp - D)))
    else:
        h_f_p, h_s_p = h_f, h_s

    has_p = has_s.astype(jnp.float32)
    if Bp != B:
        has_p = jnp.pad(has_p, ((0, Bp - B), (0, 0)))

    bias_f32 = bias.astype(jnp.float32)

    grid = (Bp // tile_b,)
    out = pl.pallas_call(
        _gated_fusion_kernel,
        out_shape=jax.ShapeDtypeStruct((Bp, Dp), dtype),
        grid_spec=pltpu.PrefetchScalarGridSpec(
            num_scalar_prefetch=0,
            grid=grid,
            in_specs=[
                pl.BlockSpec(memory_space=pltpu.SMEM),              # bias (1,)
                pl.BlockSpec((tile_b, Dp), lambda i: (i, 0)),       # h_f
                pl.BlockSpec((tile_b, Dp), lambda i: (i, 0)),       # h_s
                pl.BlockSpec((1, Dp), lambda i: (0, 0)),            # w_f
                pl.BlockSpec((1, Dp), lambda i: (0, 0)),            # w_s
                pl.BlockSpec((tile_b, 1), lambda i: (i, 0)),        # has_s
            ],
            out_specs=pl.BlockSpec((tile_b, Dp), lambda i: (i, 0)),
        ),
        compiler_params=pltpu.CompilerParams(
            dimension_semantics=("parallel",),
            vmem_limit_bytes=vmem_limit_bytes,
        ),
    )(bias_f32, h_f_p, h_s_p, w_f, w_s, has_p)

    if (Bp != B) or (Dp != D):
        out = out[:B, :D]
    return out


def gated_fusion_ref(h_f, h_s, has_s, weight, bias):
    cat = jnp.concatenate([h_f, h_s], axis=-1).astype(jnp.float32)
    z = cat @ weight.T.astype(jnp.float32) + bias.astype(jnp.float32)     # (B, 1)
    g = jax.nn.sigmoid(z) * has_s.astype(jnp.float32)
    out = h_f.astype(jnp.float32) + g * h_s.astype(jnp.float32)
    return out.astype(h_f.dtype)


def _make_inputs(key, B, D, dtype):
    k1, k2, k3, k4, k5 = jax.random.split(key, 5)
    h_f = jax.random.normal(k1, (B, D), dtype=jnp.float32).astype(dtype)
    h_s = jax.random.normal(k2, (B, D), dtype=jnp.float32).astype(dtype)
    has_s = (jax.random.uniform(k3, (B, 1)) > 0.5).astype(jnp.float32)
    bound = 1.0 / jnp.sqrt(2.0 * D)
    weight = jax.random.uniform(k4, (1, 2 * D), minval=-bound, maxval=bound,
                                dtype=jnp.float32)
    bias = jax.random.uniform(k5, (1,), minval=-bound, maxval=bound,
                              dtype=jnp.float32)
    return h_f, h_s, has_s, weight, bias


if __name__ == "__main__":
    key = jax.random.PRNGKey(0)
    k_a, k_b, k_c = jax.random.split(key, 3)

    # Test 1: small f32 case matching the module's natural shapes.
    h_f, h_s, has_s, weight, bias = _make_inputs(k_a, B=8, D=32, dtype=jnp.float32)
    out = gated_fusion(h_f, h_s, has_s, weight, bias)
    jax.block_until_ready(out)
    ref = gated_fusion_ref(h_f, h_s, has_s, weight, bias)
    assert out.shape == (8, 32)
    assert jnp.allclose(out, ref, atol=1e-5, rtol=1e-5), "f32 mismatch vs reference"

    # Test 2: ragged batch + non-multiple-of-128 D, bf16 inputs (padding path).
    h_f, h_s, has_s, weight, bias = _make_inputs(k_b, B=37, D=200, dtype=jnp.bfloat16)
    out = gated_fusion(h_f, h_s, has_s, weight, bias)
    jax.block_until_ready(out)
    ref = gated_fusion_ref(h_f, h_s, has_s, weight, bias)
    assert out.shape == (37, 200)
    assert jnp.allclose(out.astype(jnp.float32), ref.astype(jnp.float32),
                        atol=6e-2, rtol=6e-2), "bf16 mismatch vs reference"

    # Test 3: multi-step grid (explicit tile_b) exercising the tiled index maps.
    h_f, h_s, has_s, weight, bias = _make_inputs(k_c, B=64, D=32, dtype=jnp.float32)
    out = gated_fusion(h_f, h_s, has_s, weight, bias, tile_b=16)
    jax.block_until_ready(out)
    ref = gated_fusion_ref(h_f, h_s, has_s, weight, bias)
    assert out.shape == (64, 32)
    assert jnp.allclose(out, ref, atol=1e-5, rtol=1e-5), "tiled mismatch vs reference"

    print("KERNEL_OK")
</pallas_src>

<mosaic_0001>
module attributes {stable_mosaic.version = 11 : i64} {
  func.func @_gated_fusion_kernel(%arg0: i32, %arg1: memref<1xf32, #tpu.memory_space<smem>>, %arg2: memref<8x128xf32, #tpu.memory_space<vmem>>, %arg3: memref<8x128xf32, #tpu.memory_space<vmem>>, %arg4: memref<1x128xf32, #tpu.memory_space<vmem>>, %arg5: memref<1x128xf32, #tpu.memory_space<vmem>>, %arg6: memref<8x1xf32, #tpu.memory_space<vmem>>, %arg7: memref<8x128xf32, #tpu.memory_space<vmem>>) attributes {dimension_semantics = [#tpu.dimension_semantics<parallel>], iteration_bounds = array<i64: 1>, scalar_prefetch = 0 : i64, scratch_operands = 0 : i64, tpu.core_type = #tpu.core_type<tc>, window_params = [{transform_indices = @transform_0, window_bounds = array<i64: 1>}, {transform_indices = @transform_1, window_bounds = array<i64: 8, 128>}, {transform_indices = @transform_2, window_bounds = array<i64: 8, 128>}, {pipeline_mode = #tpu.pipeline_mode<synchronous>, transform_indices = @transform_3, window_bounds = array<i64: 1, 128>}, {pipeline_mode = #tpu.pipeline_mode<synchronous>, transform_indices = @transform_4, window_bounds = array<i64: 1, 128>}, {transform_indices = @transform_5, window_bounds = array<i64: 8, 1>}, {transform_indices = @transform_6, window_bounds = array<i64: 8, 128>}]} {
    %c0 = arith.constant 0 : index
    %c0_0 = arith.constant 0 : index
    %0 = vector.load %arg2[%c0, %c0_0] : memref<8x128xf32, #tpu.memory_space<vmem>>, vector<8x128xf32>
    %c0_1 = arith.constant 0 : index
    %c0_2 = arith.constant 0 : index
    %1 = vector.load %arg3[%c0_1, %c0_2] : memref<8x128xf32, #tpu.memory_space<vmem>>, vector<8x128xf32>
    %c0_3 = arith.constant 0 : index
    %c0_4 = arith.constant 0 : index
    %2 = vector.load %arg4[%c0_3, %c0_4] : memref<1x128xf32, #tpu.memory_space<vmem>>, vector<1x128xf32>
    %c0_5 = arith.constant 0 : index
    %c0_6 = arith.constant 0 : index
    %3 = vector.load %arg5[%c0_5, %c0_6] : memref<1x128xf32, #tpu.memory_space<vmem>>, vector<1x128xf32>
    %4 = vector.broadcast %2 : vector<1x128xf32> to vector<8x128xf32>
    %5 = arith.mulf %0, %4 : vector<8x128xf32>
    %6 = vector.broadcast %3 : vector<1x128xf32> to vector<8x128xf32>
    %7 = arith.mulf %1, %6 : vector<8x128xf32>
    %8 = arith.addf %5, %7 : vector<8x128xf32>
    %cst = arith.constant dense<0.000000e+00> : vector<8xf32>
    %9 = vector.multi_reduction <add>, %8, %cst [1] : vector<8x128xf32> to vector<8xf32>
    %10 = vector.shape_cast %9 : vector<8xf32> to vector<8x1xf32>
    %c0_7 = arith.constant 0 : index
    %11 = memref.load %arg1[%c0_7] : memref<1xf32, #tpu.memory_space<smem>>
    %12 = vector.broadcast %11 : f32 to vector<8x1xf32>
    %13 = arith.addf %10, %12 : vector<8x1xf32>
    %14 = arith.negf %13 : vector<8x1xf32>
    %15 = math.exp %14 : vector<8x1xf32>
    %cst_8 = arith.constant 1.000000e+00 : f32
    %16 = vector.broadcast %cst_8 : f32 to vector<8x1xf32>
    %17 = arith.addf %16, %15 : vector<8x1xf32>
    %18 = arith.divf %16, %17 : vector<8x1xf32>
    %c0_9 = arith.constant 0 : index
    %c0_10 = arith.constant 0 : index
    %19 = vector.load %arg6[%c0_9, %c0_10] : memref<8x1xf32, #tpu.memory_space<vmem>>, vector<8x1xf32>
    %20 = arith.mulf %18, %19 : vector<8x1xf32>
    %21 = vector.broadcast %20 : vector<8x1xf32> to vector<8x128xf32>
    %22 = arith.mulf %21, %1 : vector<8x128xf32>
    %23 = arith.addf %0, %22 : vector<8x128xf32>
    %c0_11 = arith.constant 0 : index
    %c0_12 = arith.constant 0 : index
    %24 = vector.load %arg7[%c0_11, %c0_12] : memref<8x128xf32, #tpu.memory_space<vmem>>, vector<8x128xf32>
    tpu.vector_store %arg7[%c0_11, %c0_12], %23 {strides = array<i32>} : memref<8x128xf32, #tpu.memory_space<vmem>>, vector<8x128xf32>,
    return
  }
  func.func @transform_0(%arg0: i32) -> i32 {
    %c0_i32 = arith.constant 0 : i32
    %c0_i32_0 = arith.constant 0 : i32
    return %c0_i32 : i32
  }
  func.func @transform_1(%arg0: i32) -> (i32, i32) {
    %c0_i32 = arith.constant 0 : i32
    %c0_i32_0 = arith.constant 0 : i32
    return %arg0, %c0_i32 : i32, i32
  }
  func.func @transform_2(%arg0: i32) -> (i32, i32) {
    %c0_i32 = arith.constant 0 : i32
    %c0_i32_0 = arith.constant 0 : i32
    return %arg0, %c0_i32 : i32, i32
  }
  func.func @transform_3(%arg0: i32) -> (i32, i32) {
    %c0_i32 = arith.constant 0 : i32
    %c0_i32_0 = arith.constant 0 : i32
    %c0_i32_1 = arith.constant 0 : i32
    return %c0_i32, %c0_i32_0 : i32, i32
  }
  func.func @transform_4(%arg0: i32) -> (i32, i32) {
    %c0_i32 = arith.constant 0 : i32
    %c0_i32_0 = arith.constant 0 : i32
    %c0_i32_1 = arith.constant 0 : i32
    return %c0_i32, %c0_i32_0 : i32, i32
  }
  func.func @transform_5(%arg0: i32) -> (i32, i32) {
    %c0_i32 = arith.constant 0 : i32
    %c0_i32_0 = arith.constant 0 : i32
    return %arg0, %c0_i32 : i32, i32
  }
  func.func @transform_6(%arg0: i32) -> (i32, i32) {
    %c0_i32 = arith.constant 0 : i32
    %c0_i32_0 = arith.constant 0 : i32
    return %arg0, %c0_i32 : i32, i32
  }
}

</mosaic_0001>

<llo_original>
// kernel: tpu_custom_call.1
$region0: #{tpu_custom_call.1}
  #allocation0 [shape = 'u32[]', space=smem, size = 0x4, offset = 0x4, fixed_abs, tag = 'smem constant byte address 0x4 - core index']
  #allocation1 [shape = 'u32[72,128]{1,0:T(1,128)}', space=vmem, size = 0x9000, scoped, tag = 'internal scratch']
  #allocation2 [shape = 'f32[1]{0:T(128)S(6)}', space=smem, size = 0x200, scoped, tag = 'scoped memory for tpu_custom_call.1']
  %s0 = inlined_call_operand.<no memory space> [shape: f32[1], index: 0, kind: input, shape index: {}]
  %s1 = inlined_call_operand.vmem [shape: f32[8,128], index: 1, kind: input, shape index: {}]
  %s2 = inlined_call_operand.hbm [shape: f32[8,128], index: 2, kind: input, shape index: {}]
  %s3 = inlined_call_operand.vmem [shape: f32[1,128], index: 3, kind: input, shape index: {}]
  %s4 = inlined_call_operand.vmem [shape: f32[1,128], index: 4, kind: input, shape index: {}]
  %s5 = inlined_call_operand.vmem [shape: f32[8,1], index: 5, kind: input, shape index: {}]
  %s6 = inlined_call_operand.hbm [shape: f32[8,128], index: 6, kind: output, shape index: {}]
  %s7 = sld [smem:[#allocation0]]
  $region38: #{tpu_custom_call.1} parent=0
    _
  %s9 = ssub.s32 1, %s7
  %s10 = scalar_select 0, %s9, %s7
  %11 = sst [smem:[#allocation2]] %s0
  $region1: #{tpu_custom_call.1} parent=0
    #allocation3 [shape = 'u8[4096]{0}', space=vmem, size = 0x1000, scoped, tag = 'input window, operand 2, single buffered']
    #allocation4 [shape = 's32[1]{0}', space=sflag, size = 0x4, scoped, tag = 'scoped memory for tpu_custom_call.1']
    #allocation5 [shape = 's32[1]{0}', space=sflag, size = 0x4, scoped, tag = 'scoped memory for tpu_custom_call.1']
    #allocation6 [shape = 'u8[4096]{0}', space=vmem, size = 0x1000, scoped, tag = 'output window, operand 0, single buffered']
    %12 = vsyncpa [#allocation4], 0
    %13 = vsyncpa [#allocation5], 0
    // Predicated region
    $region2: #{tpu_custom_call.1} parent=1 // pred_check
      _
    $region3: #{tpu_custom_call.1} parent=1 // pred_check_branch
      %15 = sbr.rel (0) target = $region5
    $region4: #{tpu_custom_call.1} parent=1 // pred_region
      _
    $region5: #{tpu_custom_call.1} parent=1 // pred_fallthru
      _
    // Predicated region
    $region6: #{tpu_custom_call.1} parent=1 // pred_check
      _
    $region7: #{tpu_custom_call.1} parent=1 // pred_check_branch
      %17 = sbr.rel (0) target = $region9
    $region8: #{tpu_custom_call.1} parent=1 // pred_region
      _
    $region9: #{tpu_custom_call.1} parent=1 // pred_fallthru
      _
    // Predicated region
    $region10: #{tpu_custom_call.1} parent=1 // pred_check
      _
    $region11: #{tpu_custom_call.1} parent=1 // pred_check_branch
      %19 = sbr.rel (0) target = $region13
    $region12: #{tpu_custom_call.1} parent=1 // pred_region
      %21 = vsyncadd [#allocation4], 0
      %s23 = sshll.u32 %s2, 4
      %s24 = int_to_ptr.hbm [resolvable:$true] %s23
      %s25 = sshll.u32 [#allocation3], 4
      %s26 = int_to_ptr.vmem [resolvable:$true] %s25
      %28 = dma.hbm_to_vmem [thread:$0]  %s24, 128, %s26, [#allocation4]
    $region13: #{tpu_custom_call.1} parent=1 // pred_fallthru
      _
    // Predicated region
    $region14: #{tpu_custom_call.1} parent=1 // pred_check
      _
    $region15: #{tpu_custom_call.1} parent=1 // pred_check_branch
      %30 = sbr.rel (0) target = $region17
    $region16: #{tpu_custom_call.1} parent=1 // pred_region
      _
    $region17: #{tpu_custom_call.1} parent=1 // pred_fallthru
      _
    // Predicated region
    $region18: #{tpu_custom_call.1} parent=1 // pred_check
      _
    $region19: #{tpu_custom_call.1} parent=1 // pred_check_branch
      %32 = sbr.rel (0) target = $region21
    $region20: #{tpu_custom_call.1} parent=1 // pred_region
      _
    $region21: #{tpu_custom_call.1} parent=1 // pred_fallthru
      _
    // Predicated region
    $region22: #{tpu_custom_call.1} parent=1 // pred_check
      _
    $region23: #{tpu_custom_call.1} parent=1 // pred_check_branch
      %34 = sbr.rel (0) target = $region25
    $region24: #{tpu_custom_call.1} parent=1 // pred_region
      _
    $region25: #{tpu_custom_call.1} parent=1 // pred_fallthru
      _
    // Predicated region
    $region26: #{tpu_custom_call.1} parent=1 // pred_check
      _
    $region27: #{tpu_custom_call.1} parent=1 // pred_check_branch
      %36 = sbr.rel (0) target = $region29
    $region28: #{tpu_custom_call.1} parent=1 // pred_region
      %38 = dma.done [#allocation4], 128
    $region29: #{tpu_custom_call.1} parent=1 // pred_fallthru
      _
    %v39 = vld [vmem:[%s1] sm:$0xff]
    %v40 = vld [vmem:[#allocation3] sm:$0xff]
    %v41 = vld [vmem:[%s3] sm:$0x1]
    %v42 = vld [vmem:[%s4] sm:$0x1]
    %v44 = vperm.slane %v41, 0
    %v46 = vmul.f32 %v39, %v44
    %v48 = vperm.slane %v42, 0
    %v50 = vmul.f32 %v40, %v48
    %v51 = vadd.f32 %v46, %v50
    %52 = vadd.xlane.f32.xlu0 %v51
    %v53 = vpop.xlane.xlu0 %52
    %s54 = sld [smem:[#allocation2]]
    %v55 = vstv %s54
    %v56 = vadd.f32 %v53, %v55
    %v57 = vxor.u32 %v56, 2147483648
    %v58 = vmul.f32 %v57, 1.442695
    %v59 = vpow.pop %v58
    %v60 = vadd.f32 %v59, 1.0
    %v61 = vrcp.pop %v60
    %v62 = vmul.f32 %v60, %v61
    %v63 = vsub.f32 1.0, %v62
    %v64 = vmul.f32 %v61, %v63
    %v65 = vadd.f32 %v61, %v64
    %vm66 = vweird.f32 %v60
    %vm67 = vweird.f32 %v61
    %vm68 = vmor %vm66, %vm67
    %v69 = vsel %vm68, %v61, %v65
    %v70 = vand.u32 2147483647, %v60
    %vm71 = vcmp.eq.f32.partialorder %v70, 8.507059e+37
    %v72 = vand.u32 %v60, 2147483648
    %v73 = vor.u32 1.1754944e-38, %v72
    %v74 = vsel %vm71, %v73, %v69
    %v75 = vmul.f32 1.0, %v74
    %v76 = vld [vmem:[%s5] sm:$0xff]
    %v77 = vmul.f32 %v75, %v76
    %79 = vset.pattern.permute.xlu0 0
    %80 = vperm.xlu0 %79, %v77
    %v81 = vpop.permute.xlu0 %80
    %v83 = vmul.f32 %v81, %v40
    %v84 = vadd.f32 %v39, %v83
    %85 = vst [vmem:[#allocation6] sm:$0xff] %v84
    // Predicated region
    $region30: #{tpu_custom_call.1} parent=1 // pred_check
      _
    $region31: #{tpu_custom_call.1} parent=1 // pred_check_branch
      %87 = sbr.rel (0) target = $region33
    $region32: #{tpu_custom_call.1} parent=1 // pred_region
      %89 = vsyncadd [#allocation5], 0
      %s91 = sshll.u32 [#allocation6], 4
      %s92 = int_to_ptr.vmem [resolvable:$true] %s91
      %s93 = sshll.u32 %s6, 4
      %s94 = int_to_ptr.hbm [resolvable:$true] %s93
      %96 = dma.vmem_to_hbm [thread:$0]  %s92, 128, %s94, [#allocation5]
    $region33: #{tpu_custom_call.1} parent=1 // pred_fallthru
      _
    // Predicated region
    $region34: #{tpu_custom_call.1} parent=1 // pred_check
      _
    $region35: #{tpu_custom_call.1} parent=1 // pred_check_branch
      %98 = sbr.rel (0) target = $region37
    $region36: #{tpu_custom_call.1} parent=1 // pred_region
      %100 = dma.done [#allocation5], 128
    $region37: #{tpu_custom_call.1} parent=1 // pred_fallthru
      _
    %101 = vsyncpa [#allocation4], 1
    %102 = vsyncpa [#allocation5], 1

</llo_original>
